<compile_context>
chip_gen: v5e
topology: v5e:2x2
jax: 0.10.0
libtpu: 0.0.40
codegen_flags: <defaults>
</compile_context>

<pallas_src>
import jax
import jax.numpy as jnp
from jax import lax
from jax.experimental import pallas as pl
from jax.experimental.pallas import tpu as pltpu


H_PAD = 128     # lane-dense padded width for all hidden dims
FEAT_PAD = 8    # raw feature dims (5/6) padded only to the 8-sublane boundary

# rows of the small-parameter slab
_R_B1, _R_B2, _R_HB, _R_INB, _R_ATTS, _R_ATTD, _R_WF, _R_BF = range(8)


# ---------------------------------------------------------------------------
# The single fused Pallas kernel (no grid: one shot, everything in VMEM)
# ---------------------------------------------------------------------------

def _fused_forward_kernel(
    adj_gg_ref, adj_ss_ref, adj_in_ref, elog_ref,
    dinv_gg_ref, dinv_ss_ref, inv_in_ref,
    xg_ref, xs_ref,
    w1_ref, w2_ref,
    hws_ref, hwd_ref, wl_ref, wr_ref,
    slab_ref,
    o_ref):
  f32 = jnp.float32
  bf16 = jnp.bfloat16

  slab = slab_ref[...]                                  # [8, 128] f32
  b1 = slab[_R_B1:_R_B1 + 1, :]
  b2 = slab[_R_B2:_R_B2 + 1, :]
  hb = slab[_R_HB:_R_HB + 1, :]
  inb = slab[_R_INB:_R_INB + 1, :]
  hatts = slab[_R_ATTS:_R_ATTS + 1, :]
  hattd = slab[_R_ATTD:_R_ATTD + 1, :]
  wf = slab[_R_WF:_R_WF + 1, :]
  bf_scalar = slab[_R_BF:_R_BF + 1, 0:1]

  def tagconv(adj_ref, dinv_ref, x_ref, w_ref, bias, K):
    # TAGConv, Horner form:  y = sum_k (A_hat^k X) W_k
    #   y = X W_K ; for k = K-1..0 : y = X W_k + A_hat y
    # A_hat y = D^-1/2 (A (D^-1/2 y)): f32 VPU row rescales around a bf16
    # MXU matmul on the raw 0/1 adjacency (exact in bf16).
    adj = adj_ref[...]                                   # bf16 [N, N]
    dinv = dinv_ref[...]                                 # f32  [N, 1]
    x = x_ref[...]                                       # bf16 [N, 8]
    y = jnp.dot(x, w_ref[K], preferred_element_type=f32)
    for k in range(K - 1, -1, -1):
      prop = dinv * jnp.dot(adj, (dinv * y).astype(bf16),
                            preferred_element_type=f32)
      y = jnp.dot(x, w_ref[k], preferred_element_type=f32) + prop
    return jnp.maximum(y + bias, 0.0)

  # conv1 / conv2 (TAGConv, relu)
  game_x = tagconv(adj_gg_ref, dinv_gg_ref, xg_ref, w1_ref, b1, K=2)  # [Ng,128]
  state_x = tagconv(adj_ss_ref, dinv_ss_ref, xs_ref, w2_ref, b2, K=3) # [Ns,128]

  game_b = game_x.astype(bf16)

  # history1: GATConv (game -> state), 1 head, edge-attr logits (mask folded
  # in as -1e30) precomputed densely in the wrapper.
  xs_p = jnp.dot(game_b, hws_ref[...], preferred_element_type=f32)    # [Ng,128]
  xd_p = jnp.dot(state_x.astype(bf16), hwd_ref[...],
                 preferred_element_type=f32)                          # [Ns,128]
  # dst attention term: VPU multiply + lane reduce -> [Ns,1]
  a_d = jnp.sum(xd_p * hattd, axis=-1, keepdims=True)
  # src attention term: one tiny MXU pass -> [1,Ng]
  a_s = lax.dot_general(hatts, xs_p, (((1,), (1,)), ((), ())),
                        preferred_element_type=f32)
  logits = a_d + a_s + elog_ref[...]                                  # [Ns,Ng]
  logits = jnp.where(logits > 0, logits, 0.2 * logits)                # leaky_relu
  # clamp the shift so rows with no edges (all ~-1e30) stay at exp()==0
  m = jnp.maximum(jnp.max(logits, axis=-1, keepdims=True), jnp.float32(-1e20))
  p = jnp.exp(logits - m)
  denom = jnp.sum(p, axis=-1, keepdims=True)
  alpha = p * pl.reciprocal(jnp.maximum(denom, 1e-20), approx=True)
  history_x = jnp.maximum(
      jnp.dot(alpha.astype(bf16), xs_p.astype(bf16),
              preferred_element_type=f32) + hb, 0.0)                  # [Ns,128]

  # in1: SAGEConv (mean aggr), mean folded as a precomputed 1/deg row rescale.
  agg = inv_in_ref[...] * jnp.dot(adj_in_ref[...], game_b,
                                  preferred_element_type=f32)         # [Ns,128]
  in_x = jnp.maximum(
      jnp.dot(agg.astype(bf16), wl_ref[...], preferred_element_type=f32)
      + jnp.dot(history_x.astype(bf16), wr_ref[...],
                preferred_element_type=f32)
      + inb, 0.0)                                                     # [Ns,128]

  # lin + lin_last fused into one [H,1] affine; written lane-dense as [1,Ns].
  out_row = lax.dot_general(wf, in_x, (((1,), (1,)), ((), ())),
                            preferred_element_type=f32) + bf_scalar
  o_ref[...] = out_row


def fused_forward(operands, n_state):
  total_bytes = sum(int(x.size) * x.dtype.itemsize for x in operands)
  vmem_limit = int(min(100 * 1024 * 1024,
                       max(16 * 1024 * 1024, 2 * total_bytes)))
  return pl.pallas_call(
      _fused_forward_kernel,
      out_shape=jax.ShapeDtypeStruct((1, n_state), jnp.float32),
      in_specs=[pl.BlockSpec(memory_space=pltpu.MemorySpace.VMEM)
                for _ in operands],
      out_specs=pl.BlockSpec(memory_space=pltpu.MemorySpace.VMEM),
      compiler_params=pltpu.CompilerParams(vmem_limit_bytes=vmem_limit),
  )(*operands)


# ---------------------------------------------------------------------------
# JAX glue: dense adjacency (irregular scatter), degree vectors, weight
# padding / fusion into the kernel operand set.
# ---------------------------------------------------------------------------

def dense_adj(edge_index, n_dst, n_src):
  src, dst = edge_index[0], edge_index[1]
  a = jnp.zeros((n_dst, n_src), jnp.float32)
  return a.at[dst, src].add(1.0)


def _pad2(a, rows, cols):
  return jnp.pad(a, ((0, rows - a.shape[0]), (0, cols - a.shape[1])))


def prepare_padded_params(params, h_pad=H_PAD, feat_pad=FEAT_PAD):
  f32, bf16 = jnp.float32, jnp.bfloat16

  def pad_w_stack(w):  # [K+1, F, H] -> [K+1, feat_pad, h_pad]
    return jnp.pad(w, ((0, 0), (0, feat_pad - w.shape[1]),
                       (0, h_pad - w.shape[2])))

  # lin and lin_last are both affine with no activation between -> fuse.
  w_fused = params["lin_w"] @ params["lin_last_w"]                         # [H,1]
  b_fused = params["lin_b"] @ params["lin_last_w"] + params["lin_last_b"]  # [1,1]

  slab_rows = [None] * 8
  slab_rows[_R_B1] = _pad2(params["conv1_b"], 1, h_pad)
  slab_rows[_R_B2] = _pad2(params["conv2_b"], 1, h_pad)
  slab_rows[_R_HB] = _pad2(params["hist_b"], 1, h_pad)
  slab_rows[_R_INB] = _pad2(params["in1_b"], 1, h_pad)
  slab_rows[_R_ATTS] = _pad2(params["hist_att_src"], 1, h_pad)
  slab_rows[_R_ATTD] = _pad2(params["hist_att_dst"].T, 1, h_pad)
  slab_rows[_R_WF] = _pad2(w_fused.T, 1, h_pad)
  slab_rows[_R_BF] = _pad2(b_fused, 1, h_pad)
  slab = jnp.concatenate(slab_rows, axis=0).astype(f32)                    # [8,128]

  return {
      "w1": pad_w_stack(params["conv1_w"]).astype(bf16),   # [3,8,128]
      "w2": pad_w_stack(params["conv2_w"]).astype(bf16),   # [4,8,128]
      "hws": _pad2(params["hist_w_src"], h_pad, h_pad).astype(bf16),
      "hwd": _pad2(params["hist_w_dst"], h_pad, h_pad).astype(bf16),
      "wl": _pad2(params["in1_wl"], h_pad, h_pad).astype(bf16),
      "wr": _pad2(params["in1_wr"], h_pad, h_pad).astype(bf16),
      "slab": slab,
  }


# ---------------------------------------------------------------------------
# Parameters (deterministic synthetic init) and module forward
# ---------------------------------------------------------------------------

def init_params(key, hidden_channels, out_channels,
                game_feat=5, state_feat=6, edge_dim=2):
  H, C = hidden_channels, out_channels
  ks = jax.random.split(key, 16)
  r = lambda k, s: (0.1 * jax.random.normal(k, s)).astype(jnp.float32)
  return {
      "conv1_w": r(ks[0], (3, game_feat, H)),   # TAGConv(5,H,K=2): K+1 weights
      "conv1_b": r(ks[1], (1, H)),
      "conv2_w": r(ks[2], (4, state_feat, H)),  # TAGConv(6,H,K=3)
      "conv2_b": r(ks[3], (1, H)),
      "hist_w_src": r(ks[4], (H, H)),
      "hist_w_dst": r(ks[5], (H, H)),
      "hist_att_src": r(ks[6], (1, H)),
      "hist_att_dst": r(ks[7], (H, 1)),
      "hist_w_edge": r(ks[8], (edge_dim, H)),
      "hist_att_edge": r(ks[9], (H, 1)),
      "hist_b": r(ks[10], (1, H)),
      "in1_wl": r(ks[11], (H, H)),
      "in1_wr": r(ks[12], (H, H)),
      "in1_b": r(ks[13], (1, H)),
      "lin_w": r(ks[14], (H, C)),
      "lin_b": jnp.zeros((1, C), jnp.float32),
      "lin_last_w": r(ks[15], (C, 1)),
      "lin_last_b": jnp.zeros((1, 1), jnp.float32),
  }


def state_model_encoder_export(params, x_dict, edge_index_dict, edge_attr):
  x_game = x_dict["game_vertex"]
  x_state = x_dict["state_vertex"]
  n_game, n_state = x_game.shape[0], x_state.shape[0]

  pp = prepare_padded_params(params)

  # Raw 0/1 dense adjacency (counts); normalization folded into [N,1] vectors.
  adj_gg = dense_adj(edge_index_dict[("game_vertex", "to", "game_vertex")],
                     n_game, n_game)
  adj_ss = dense_adj(edge_index_dict[("state_vertex", "parent_of",
                                      "state_vertex")], n_state, n_state)
  adj_in = dense_adj(edge_index_dict[("game_vertex", "in", "state_vertex")],
                     n_state, n_game)
  ei_h = edge_index_dict[("game_vertex", "history", "state_vertex")]
  mask_h = dense_adj(ei_h, n_state, n_game)

  def dinv_sqrt(adj):
    deg = jnp.sum(adj, axis=1, keepdims=True)
    return jnp.where(deg > 0, lax.rsqrt(jnp.maximum(deg, 1e-12)), 0.0)

  dinv_gg = dinv_sqrt(adj_gg)                                  # [Ng,1] f32
  dinv_ss = dinv_sqrt(adj_ss)                                  # [Ns,1] f32
  deg_in = jnp.sum(adj_in, axis=1, keepdims=True)
  inv_in = jnp.where(deg_in > 0, 1.0 / jnp.maximum(deg_in, 1.0), 0.0)

  # Edge-attribute attention logits scattered densely; history mask folded in
  # (-1e30 on non-edges) so the kernel needs no separate mask operand.
  v_edge = params["hist_w_edge"] @ params["hist_att_edge"]     # [2,1]
  alpha_e = (edge_attr @ v_edge)[:, 0]                         # [E]
  elog = jnp.zeros((n_state, n_game), jnp.float32).at[ei_h[1], ei_h[0]].add(alpha_e)
  elog = jnp.where(mask_h > 0, elog, jnp.float32(-1e30))

  # Raw features padded only to the 8-sublane boundary (not 128 lanes).
  xg = jnp.pad(x_game, ((0, 0), (0, FEAT_PAD - x_game.shape[1]))).astype(jnp.bfloat16)
  xs = jnp.pad(x_state, ((0, 0), (0, FEAT_PAD - x_state.shape[1]))).astype(jnp.bfloat16)

  operands = (
      adj_gg.astype(jnp.bfloat16), adj_ss.astype(jnp.bfloat16),
      adj_in.astype(jnp.bfloat16), elog,
      dinv_gg, dinv_ss, inv_in,
      xg, xs,
      pp["w1"], pp["w2"], pp["hws"], pp["hwd"], pp["wl"], pp["wr"],
      pp["slab"],
  )

  out_row = fused_forward(operands, n_state)                   # [1, Ns]
  state_out = out_row.reshape(n_state, 1)

  return {"state_vertex": state_out, "game_vertex": x_game}


# ---------------------------------------------------------------------------
if __name__ == "__main__":
  key = jax.random.PRNGKey(0)
  k_param, k_g, k_s, k_e = jax.random.split(key, 4)

  hidden_channels, out_channels = 32, 8
  n_game, n_state = 16, 8

  params = init_params(k_param, hidden_channels, out_channels)

  x_dict = {
      "game_vertex": jax.random.normal(k_g, (n_game, 5), jnp.float32),
      "state_vertex": jax.random.normal(k_s, (n_state, 6), jnp.float32),
  }

  # deterministic small graphs
  gg_src = jnp.arange(n_game, dtype=jnp.int32)
  gg_dst = (gg_src + 1) % n_game
  ss_src = jnp.arange(n_state - 1, dtype=jnp.int32)
  ss_dst = ss_src + 1
  e_hist = 12
  h_src = (jnp.arange(e_hist, dtype=jnp.int32) * 3) % n_game
  h_dst = jnp.arange(e_hist, dtype=jnp.int32) % n_state
  in_src = (jnp.arange(n_state, dtype=jnp.int32) * 2) % n_game
  in_dst = jnp.arange(n_state, dtype=jnp.int32)

  edge_index_dict = {
      ("game_vertex", "to", "game_vertex"): jnp.stack([gg_src, gg_dst]),
      ("state_vertex", "parent_of", "state_vertex"): jnp.stack([ss_src, ss_dst]),
      ("game_vertex", "history", "state_vertex"): jnp.stack([h_src, h_dst]),
      ("game_vertex", "in", "state_vertex"): jnp.stack([in_src, in_dst]),
  }
  edge_attr = jax.random.normal(k_e, (e_hist, 2), jnp.float32)

  fwd = jax.jit(state_model_encoder_export)
  z_dict = fwd(params, x_dict, edge_index_dict, edge_attr)
  jax.block_until_ready(z_dict)

  assert z_dict["state_vertex"].shape == (n_state, 1)
  assert z_dict["game_vertex"].shape == (n_game, 5)
  print("KERNEL_OK")
</pallas_src>

<mosaic_0001>
module attributes {stable_mosaic.version = 11 : i64} {
  func.func @_fused_forward_kernel(%arg0: memref<16x16xbf16, #tpu.memory_space<vmem>>, %arg1: memref<8x8xbf16, #tpu.memory_space<vmem>>, %arg2: memref<8x16xbf16, #tpu.memory_space<vmem>>, %arg3: memref<8x16xf32, #tpu.memory_space<vmem>>, %arg4: memref<16x1xf32, #tpu.memory_space<vmem>>, %arg5: memref<8x1xf32, #tpu.memory_space<vmem>>, %arg6: memref<8x1xf32, #tpu.memory_space<vmem>>, %arg7: memref<16x8xbf16, #tpu.memory_space<vmem>>, %arg8: memref<8x8xbf16, #tpu.memory_space<vmem>>, %arg9: memref<3x8x128xbf16, #tpu.memory_space<vmem>>, %arg10: memref<4x8x128xbf16, #tpu.memory_space<vmem>>, %arg11: memref<128x128xbf16, #tpu.memory_space<vmem>>, %arg12: memref<128x128xbf16, #tpu.memory_space<vmem>>, %arg13: memref<128x128xbf16, #tpu.memory_space<vmem>>, %arg14: memref<128x128xbf16, #tpu.memory_space<vmem>>, %arg15: memref<8x128xf32, #tpu.memory_space<vmem>>, %arg16: memref<1x8xf32, #tpu.memory_space<vmem>>) attributes {dimension_semantics = [], scalar_prefetch = 0 : i64, scratch_operands = 0 : i64, tpu.core_type = #tpu.core_type<tc>} {
    %c0 = arith.constant 0 : index
    %c0_0 = arith.constant 0 : index
    %0 = vector.load %arg15[%c0, %c0_0] : memref<8x128xf32, #tpu.memory_space<vmem>>, vector<8x128xf32>
    %1 = vector.extract_strided_slice %0 {offsets = [0, 0], sizes = [1, 128], strides = [1, 1]} : vector<8x128xf32> to vector<1x128xf32>
    %2 = vector.extract_strided_slice %0 {offsets = [1, 0], sizes = [1, 128], strides = [1, 1]} : vector<8x128xf32> to vector<1x128xf32>
    %3 = vector.extract_strided_slice %0 {offsets = [2, 0], sizes = [1, 128], strides = [1, 1]} : vector<8x128xf32> to vector<1x128xf32>
    %4 = vector.extract_strided_slice %0 {offsets = [3, 0], sizes = [1, 128], strides = [1, 1]} : vector<8x128xf32> to vector<1x128xf32>
    %5 = vector.extract_strided_slice %0 {offsets = [4, 0], sizes = [1, 128], strides = [1, 1]} : vector<8x128xf32> to vector<1x128xf32>
    %6 = vector.extract_strided_slice %0 {offsets = [5, 0], sizes = [1, 128], strides = [1, 1]} : vector<8x128xf32> to vector<1x128xf32>
    %7 = vector.extract_strided_slice %0 {offsets = [6, 0], sizes = [1, 128], strides = [1, 1]} : vector<8x128xf32> to vector<1x128xf32>
    %8 = vector.extract_strided_slice %0 {offsets = [7, 0], sizes = [1, 1], strides = [1, 1]} : vector<8x128xf32> to vector<1x1xf32>
    %c0_1 = arith.constant 0 : index
    %c0_2 = arith.constant 0 : index
    %9 = vector.load %arg0[%c0_1, %c0_2] : memref<16x16xbf16, #tpu.memory_space<vmem>>, vector<16x16xbf16>
    %c0_3 = arith.constant 0 : index
    %c0_4 = arith.constant 0 : index
    %10 = vector.load %arg4[%c0_3, %c0_4] : memref<16x1xf32, #tpu.memory_space<vmem>>, vector<16x1xf32>
    %c0_5 = arith.constant 0 : index
    %c0_6 = arith.constant 0 : index
    %11 = vector.load %arg7[%c0_5, %c0_6] : memref<16x8xbf16, #tpu.memory_space<vmem>>, vector<16x8xbf16>
    %c2 = arith.constant 2 : index
    %c0_7 = arith.constant 0 : index
    %c0_8 = arith.constant 0 : index
    %12 = vector.load %arg9[%c2, %c0_7, %c0_8] : memref<3x8x128xbf16, #tpu.memory_space<vmem>>, vector<1x8x128xbf16>
    %13 = vector.shape_cast %12 : vector<1x8x128xbf16> to vector<8x128xbf16>
    %cst = arith.constant dense<0.000000e+00> : vector<16x128xf32>
    %14 = tpu.matmul %11, %13, %cst {dimension_numbers = #tpu.dot_dimension_numbers<[1], [0], [0], [1], [0, 0, 1, 1], [], []>} : vector<16x8xbf16>, vector<8x128xbf16>, vector<16x128xf32> -> vector<16x128xf32>
    %15 = vector.broadcast %10 : vector<16x1xf32> to vector<16x128xf32>
    %16 = arith.mulf %15, %14 : vector<16x128xf32>
    %17 = arith.truncf %16 : vector<16x128xf32> to vector<16x128xbf16>
    %cst_9 = arith.constant dense<0.000000e+00> : vector<16x128xf32>
    %18 = tpu.matmul %9, %17, %cst_9 {dimension_numbers = #tpu.dot_dimension_numbers<[1], [0], [0], [1], [0, 0, 1, 1], [], []>} : vector<16x16xbf16>, vector<16x128xbf16>, vector<16x128xf32> -> vector<16x128xf32>
    %19 = vector.broadcast %10 : vector<16x1xf32> to vector<16x128xf32>
    %20 = arith.mulf %19, %18 : vector<16x128xf32>
    %c1 = arith.constant 1 : index
    %c0_10 = arith.constant 0 : index
    %c0_11 = arith.constant 0 : index
    %21 = vector.load %arg9[%c1, %c0_10, %c0_11] : memref<3x8x128xbf16, #tpu.memory_space<vmem>>, vector<1x8x128xbf16>
    %22 = vector.shape_cast %21 : vector<1x8x128xbf16> to vector<8x128xbf16>
    %cst_12 = arith.constant dense<0.000000e+00> : vector<16x128xf32>
    %23 = tpu.matmul %11, %22, %cst_12 {dimension_numbers = #tpu.dot_dimension_numbers<[1], [0], [0], [1], [0, 0, 1, 1], [], []>} : vector<16x8xbf16>, vector<8x128xbf16>, vector<16x128xf32> -> vector<16x128xf32>
    %24 = arith.addf %23, %20 : vector<16x128xf32>
    %25 = vector.broadcast %10 : vector<16x1xf32> to vector<16x128xf32>
    %26 = arith.mulf %25, %24 : vector<16x128xf32>
    %27 = arith.truncf %26 : vector<16x128xf32> to vector<16x128xbf16>
    %cst_13 = arith.constant dense<0.000000e+00> : vector<16x128xf32>
    %28 = tpu.matmul %9, %27, %cst_13 {dimension_numbers = #tpu.dot_dimension_numbers<[1], [0], [0], [1], [0, 0, 1, 1], [], []>} : vector<16x16xbf16>, vector<16x128xbf16>, vector<16x128xf32> -> vector<16x128xf32>
    %29 = vector.broadcast %10 : vector<16x1xf32> to vector<16x128xf32>
    %30 = arith.mulf %29, %28 : vector<16x128xf32>
    %c0_14 = arith.constant 0 : index
    %c0_15 = arith.constant 0 : index
    %c0_16 = arith.constant 0 : index
    %31 = vector.load %arg9[%c0_14, %c0_15, %c0_16] : memref<3x8x128xbf16, #tpu.memory_space<vmem>>, vector<1x8x128xbf16>
    %32 = vector.shape_cast %31 : vector<1x8x128xbf16> to vector<8x128xbf16>
    %cst_17 = arith.constant dense<0.000000e+00> : vector<16x128xf32>
    %33 = tpu.matmul %11, %32, %cst_17 {dimension_numbers = #tpu.dot_dimension_numbers<[1], [0], [0], [1], [0, 0, 1, 1], [], []>} : vector<16x8xbf16>, vector<8x128xbf16>, vector<16x128xf32> -> vector<16x128xf32>
    %34 = arith.addf %33, %30 : vector<16x128xf32>
    %35 = vector.broadcast %1 : vector<1x128xf32> to vector<16x128xf32>
    %36 = arith.addf %34, %35 : vector<16x128xf32>
    %cst_18 = arith.constant 0.000000e+00 : f32
    %37 = vector.broadcast %cst_18 : f32 to vector<16x128xf32>
    %38 = arith.maximumf %36, %37 : vector<16x128xf32>
    %c0_19 = arith.constant 0 : index
    %c0_20 = arith.constant 0 : index
    %39 = vector.load %arg1[%c0_19, %c0_20] : memref<8x8xbf16, #tpu.memory_space<vmem>>, vector<8x8xbf16>
    %c0_21 = arith.constant 0 : index
    %c0_22 = arith.constant 0 : index
    %40 = vector.load %arg5[%c0_21, %c0_22] : memref<8x1xf32, #tpu.memory_space<vmem>>, vector<8x1xf32>
    %c0_23 = arith.constant 0 : index
    %c0_24 = arith.constant 0 : index
    %41 = vector.load %arg8[%c0_23, %c0_24] : memref<8x8xbf16, #tpu.memory_space<vmem>>, vector<8x8xbf16>
    %c3 = arith.constant 3 : index
    %c0_25 = arith.constant 0 : index
    %c0_26 = arith.constant 0 : index
    %42 = vector.load %arg10[%c3, %c0_25, %c0_26] : memref<4x8x128xbf16, #tpu.memory_space<vmem>>, vector<1x8x128xbf16>
    %43 = vector.shape_cast %42 : vector<1x8x128xbf16> to vector<8x128xbf16>
    %cst_27 = arith.constant dense<0.000000e+00> : vector<8x128xf32>
    %44 = tpu.matmul %41, %43, %cst_27 {dimension_numbers = #tpu.dot_dimension_numbers<[1], [0], [0], [1], [0, 0, 1, 1], [], []>} : vector<8x8xbf16>, vector<8x128xbf16>, vector<8x128xf32> -> vector<8x128xf32>
    %45 = vector.broadcast %40 : vector<8x1xf32> to vector<8x128xf32>
    %46 = arith.mulf %45, %44 : vector<8x128xf32>
    %47 = arith.truncf %46 : vector<8x128xf32> to vector<8x128xbf16>
    %cst_28 = arith.constant dense<0.000000e+00> : vector<8x128xf32>
    %48 = tpu.matmul %39, %47, %cst_28 {dimension_numbers = #tpu.dot_dimension_numbers<[1], [0], [0], [1], [0, 0, 1, 1], [], []>} : vector<8x8xbf16>, vector<8x128xbf16>, vector<8x128xf32> -> vector<8x128xf32>
    %49 = vector.broadcast %40 : vector<8x1xf32> to vector<8x128xf32>
    %50 = arith.mulf %49, %48 : vector<8x128xf32>
    %c2_29 = arith.constant 2 : index
    %c0_30 = arith.constant 0 : index
    %c0_31 = arith.constant 0 : index
    %51 = vector.load %arg10[%c2_29, %c0_30, %c0_31] : memref<4x8x128xbf16, #tpu.memory_space<vmem>>, vector<1x8x128xbf16>
    %52 = vector.shape_cast %51 : vector<1x8x128xbf16> to vector<8x128xbf16>
    %cst_32 = arith.constant dense<0.000000e+00> : vector<8x128xf32>
    %53 = tpu.matmul %41, %52, %cst_32 {dimension_numbers = #tpu.dot_dimension_numbers<[1], [0], [0], [1], [0, 0, 1, 1], [], []>} : vector<8x8xbf16>, vector<8x128xbf16>, vector<8x128xf32> -> vector<8x128xf32>
    %54 = arith.addf %53, %50 : vector<8x128xf32>
    %55 = vector.broadcast %40 : vector<8x1xf32> to vector<8x128xf32>
    %56 = arith.mulf %55, %54 : vector<8x128xf32>
    %57 = arith.truncf %56 : vector<8x128xf32> to vector<8x128xbf16>
    %cst_33 = arith.constant dense<0.000000e+00> : vector<8x128xf32>
    %58 = tpu.matmul %39, %57, %cst_33 {dimension_numbers = #tpu.dot_dimension_numbers<[1], [0], [0], [1], [0, 0, 1, 1], [], []>} : vector<8x8xbf16>, vector<8x128xbf16>, vector<8x128xf32> -> vector<8x128xf32>
    %59 = vector.broadcast %40 : vector<8x1xf32> to vector<8x128xf32>
    %60 = arith.mulf %59, %58 : vector<8x128xf32>
    %c1_34 = arith.constant 1 : index
    %c0_35 = arith.constant 0 : index
    %c0_36 = arith.constant 0 : index
    %61 = vector.load %arg10[%c1_34, %c0_35, %c0_36] : memref<4x8x128xbf16, #tpu.memory_space<vmem>>, vector<1x8x128xbf16>
    %62 = vector.shape_cast %61 : vector<1x8x128xbf16> to vector<8x128xbf16>
    %cst_37 = arith.constant dense<0.000000e+00> : vector<8x128xf32>
    %63 = tpu.matmul %41, %62, %cst_37 {dimension_numbers = #tpu.dot_dimension_numbers<[1], [0], [0], [1], [0, 0, 1, 1], [], []>} : vector<8x8xbf16>, vector<8x128xbf16>, vector<8x128xf32> -> vector<8x128xf32>
    %64 = arith.addf %63, %60 : vector<8x128xf32>
    %65 = vector.broadcast %40 : vector<8x1xf32> to vector<8x128xf32>
    %66 = arith.mulf %65, %64 : vector<8x128xf32>
    %67 = arith.truncf %66 : vector<8x128xf32> to vector<8x128xbf16>
    %cst_38 = arith.constant dense<0.000000e+00> : vector<8x128xf32>
    %68 = tpu.matmul %39, %67, %cst_38 {dimension_numbers = #tpu.dot_dimension_numbers<[1], [0], [0], [1], [0, 0, 1, 1], [], []>} : vector<8x8xbf16>, vector<8x128xbf16>, vector<8x128xf32> -> vector<8x128xf32>
    %69 = vector.broadcast %40 : vector<8x1xf32> to vector<8x128xf32>
    %70 = arith.mulf %69, %68 : vector<8x128xf32>
    %c0_39 = arith.constant 0 : index
    %c0_40 = arith.constant 0 : index
    %c0_41 = arith.constant 0 : index
    %71 = vector.load %arg10[%c0_39, %c0_40, %c0_41] : memref<4x8x128xbf16, #tpu.memory_space<vmem>>, vector<1x8x128xbf16>
    %72 = vector.shape_cast %71 : vector<1x8x128xbf16> to vector<8x128xbf16>
    %cst_42 = arith.constant dense<0.000000e+00> : vector<8x128xf32>
    %73 = tpu.matmul %41, %72, %cst_42 {dimension_numbers = #tpu.dot_dimension_numbers<[1], [0], [0], [1], [0, 0, 1, 1], [], []>} : vector<8x8xbf16>, vector<8x128xbf16>, vector<8x128xf32> -> vector<8x128xf32>
    %74 = arith.addf %73, %70 : vector<8x128xf32>
    %75 = vector.broadcast %2 : vector<1x128xf32> to vector<8x128xf32>
    %76 = arith.addf %74, %75 : vector<8x128xf32>
    %cst_43 = arith.constant 0.000000e+00 : f32
    %77 = vector.broadcast %cst_43 : f32 to vector<8x128xf32>
    %78 = arith.maximumf %76, %77 : vector<8x128xf32>
    %79 = arith.truncf %38 : vector<16x128xf32> to vector<16x128xbf16>
    %c0_44 = arith.constant 0 : index
    %c0_45 = arith.constant 0 : index
    %80 = vector.load %arg11[%c0_44, %c0_45] : memref<128x128xbf16, #tpu.memory_space<vmem>>, vector<128x128xbf16>
    %cst_46 = arith.constant dense<0.000000e+00> : vector<16x128xf32>
    %81 = tpu.matmul %79, %80, %cst_46 {dimension_numbers = #tpu.dot_dimension_numbers<[1], [0], [0], [1], [0, 0, 1, 1], [], []>} : vector<16x128xbf16>, vector<128x128xbf16>, vector<16x128xf32> -> vector<16x128xf32>
    %82 = arith.truncf %78 : vector<8x128xf32> to vector<8x128xbf16>
    %c0_47 = arith.constant 0 : index
    %c0_48 = arith.constant 0 : index
    %83 = vector.load %arg12[%c0_47, %c0_48] : memref<128x128xbf16, #tpu.memory_space<vmem>>, vector<128x128xbf16>
    %cst_49 = arith.constant dense<0.000000e+00> : vector<8x128xf32>
    %84 = tpu.matmul %82, %83, %cst_49 {dimension_numbers = #tpu.dot_dimension_numbers<[1], [0], [0], [1], [0, 0, 1, 1], [], []>} : vector<8x128xbf16>, vector<128x128xbf16>, vector<8x128xf32> -> vector<8x128xf32>
    %85 = vector.broadcast %6 : vector<1x128xf32> to vector<8x128xf32>
    %86 = arith.mulf %84, %85 : vector<8x128xf32>
    %cst_50 = arith.constant dense<0.000000e+00> : vector<8xf32>
    %87 = vector.multi_reduction <add>, %86, %cst_50 [1] : vector<8x128xf32> to vector<8xf32>
    %88 = vector.shape_cast %87 : vector<8xf32> to vector<8x1xf32>
    %cst_51 = arith.constant dense<0.000000e+00> : vector<1x16xf32>
    %89 = tpu.matmul %5, %81, %cst_51 {dimension_numbers = #tpu.dot_dimension_numbers<[1], [1], [0], [0], [0, 0, 1, 0], [], []>} : vector<1x128xf32>, vector<16x128xf32>, vector<1x16xf32> -> vector<1x16xf32>
    %90 = vector.broadcast %88 : vector<8x1xf32> to vector<8x16xf32>
    %91 = vector.broadcast %89 : vector<1x16xf32> to vector<8x16xf32>
    %92 = arith.addf %90, %91 : vector<8x16xf32>
    %c0_52 = arith.constant 0 : index
    %c0_53 = arith.constant 0 : index
    %93 = vector.load %arg3[%c0_52, %c0_53] : memref<8x16xf32, #tpu.memory_space<vmem>>, vector<8x16xf32>
    %94 = arith.addf %92, %93 : vector<8x16xf32>
    %cst_54 = arith.constant 0.000000e+00 : f32
    %95 = vector.broadcast %cst_54 : f32 to vector<8x16xf32>
    %96 = arith.cmpf ogt, %94, %95 : vector<8x16xf32>
    %cst_55 = arith.constant 2.000000e-01 : f32
    %97 = vector.broadcast %cst_55 : f32 to vector<8x16xf32>
    %98 = arith.mulf %97, %94 : vector<8x16xf32>
    %99 = arith.select %96, %94, %98 : vector<8x16xi1>, vector<8x16xf32>
    %cst_56 = arith.constant dense<0xFF800000> : vector<8xf32>
    %100 = vector.multi_reduction <maximumf>, %99, %cst_56 [1] : vector<8x16xf32> to vector<8xf32>
    %101 = vector.shape_cast %100 : vector<8xf32> to vector<8x1xf32>
    %cst_57 = arith.constant -1.000000e+20 : f32
    %102 = vector.broadcast %cst_57 : f32 to vector<8x1xf32>
    %103 = arith.maximumf %101, %102 : vector<8x1xf32>
    %104 = vector.broadcast %103 : vector<8x1xf32> to vector<8x16xf32>
    %105 = arith.subf %99, %104 : vector<8x16xf32>
    %106 = math.exp %105 : vector<8x16xf32>
    %cst_58 = arith.constant dense<0.000000e+00> : vector<8xf32>
    %107 = vector.multi_reduction <add>, %106, %cst_58 [1] : vector<8x16xf32> to vector<8xf32>
    %108 = vector.shape_cast %107 : vector<8xf32> to vector<8x1xf32>
    %cst_59 = arith.constant 9.99999968E-21 : f32
    %109 = vector.broadcast %cst_59 : f32 to vector<8x1xf32>
    %110 = arith.maximumf %108, %109 : vector<8x1xf32>
    %111 = tpu.reciprocal %110 {approx = true} : vector<8x1xf32> -> vector<8x1xf32>
    %112 = vector.broadcast %111 : vector<8x1xf32> to vector<8x16xf32>
    %113 = arith.mulf %106, %112 : vector<8x16xf32>
    %114 = arith.truncf %113 : vector<8x16xf32> to vector<8x16xbf16>
    %115 = arith.truncf %81 : vector<16x128xf32> to vector<16x128xbf16>
    %cst_60 = arith.constant dense<0.000000e+00> : vector<8x128xf32>
    %116 = tpu.matmul %114, %115, %cst_60 {dimension_numbers = #tpu.dot_dimension_numbers<[1], [0], [0], [1], [0, 0, 1, 1], [], []>} : vector<8x16xbf16>, vector<16x128xbf16>, vector<8x128xf32> -> vector<8x128xf32>
    %117 = vector.broadcast %3 : vector<1x128xf32> to vector<8x128xf32>
    %118 = arith.addf %116, %117 : vector<8x128xf32>
    %cst_61 = arith.constant 0.000000e+00 : f32
    %119 = vector.broadcast %cst_61 : f32 to vector<8x128xf32>
    %120 = arith.maximumf %118, %119 : vector<8x128xf32>
    %c0_62 = arith.constant 0 : index
    %c0_63 = arith.constant 0 : index
    %121 = vector.load %arg6[%c0_62, %c0_63] : memref<8x1xf32, #tpu.memory_space<vmem>>, vector<8x1xf32>
    %c0_64 = arith.constant 0 : index
    %c0_65 = arith.constant 0 : index
    %122 = vector.load %arg2[%c0_64, %c0_65] : memref<8x16xbf16, #tpu.memory_space<vmem>>, vector<8x16xbf16>
    %cst_66 = arith.constant dense<0.000000e+00> : vector<8x128xf32>
    %123 = tpu.matmul %122, %79, %cst_66 {dimension_numbers = #tpu.dot_dimension_numbers<[1], [0], [0], [1], [0, 0, 1, 1], [], []>} : vector<8x16xbf16>, vector<16x128xbf16>, vector<8x128xf32> -> vector<8x128xf32>
    %124 = vector.broadcast %121 : vector<8x1xf32> to vector<8x128xf32>
    %125 = arith.mulf %124, %123 : vector<8x128xf32>
    %126 = arith.truncf %125 : vector<8x128xf32> to vector<8x128xbf16>
    %c0_67 = arith.constant 0 : index
    %c0_68 = arith.constant 0 : index
    %127 = vector.load %arg13[%c0_67, %c0_68] : memref<128x128xbf16, #tpu.memory_space<vmem>>, vector<128x128xbf16>
    %cst_69 = arith.constant dense<0.000000e+00> : vector<8x128xf32>
    %128 = tpu.matmul %126, %127, %cst_69 {dimension_numbers = #tpu.dot_dimension_numbers<[1], [0], [0], [1], [0, 0, 1, 1], [], []>} : vector<8x128xbf16>, vector<128x128xbf16>, vector<8x128xf32> -> vector<8x128xf32>
    %129 = arith.truncf %120 : vector<8x128xf32> to vector<8x128xbf16>
    %c0_70 = arith.constant 0 : index
    %c0_71 = arith.constant 0 : index
    %130 = vector.load %arg14[%c0_70, %c0_71] : memref<128x128xbf16, #tpu.memory_space<vmem>>, vector<128x128xbf16>
    %cst_72 = arith.constant dense<0.000000e+00> : vector<8x128xf32>
    %131 = tpu.matmul %129, %130, %cst_72 {dimension_numbers = #tpu.dot_dimension_numbers<[1], [0], [0], [1], [0, 0, 1, 1], [], []>} : vector<8x128xbf16>, vector<128x128xbf16>, vector<8x128xf32> -> vector<8x128xf32>
    %132 = arith.addf %128, %131 : vector<8x128xf32>
    %133 = vector.broadcast %4 : vector<1x128xf32> to vector<8x128xf32>
    %134 = arith.addf %132, %133 : vector<8x128xf32>
    %cst_73 = arith.constant 0.000000e+00 : f32
    %135 = vector.broadcast %cst_73 : f32 to vector<8x128xf32>
    %136 = arith.maximumf %134, %135 : vector<8x128xf32>
    %cst_74 = arith.constant dense<0.000000e+00> : vector<1x8xf32>
    %137 = tpu.matmul %7, %136, %cst_74 {dimension_numbers = #tpu.dot_dimension_numbers<[1], [1], [0], [0], [0, 0, 1, 0], [], []>} : vector<1x128xf32>, vector<8x128xf32>, vector<1x8xf32> -> vector<1x8xf32>
    %138 = vector.broadcast %8 : vector<1x1xf32> to vector<1x8xf32>
    %139 = arith.addf %137, %138 : vector<1x8xf32>
    %c0_75 = arith.constant 0 : index
    %c0_76 = arith.constant 0 : index
    %140 = vector.load %arg16[%c0_75, %c0_76] : memref<1x8xf32, #tpu.memory_space<vmem>>, vector<1x8xf32>
    tpu.vector_store %arg16[%c0_75, %c0_76], %139 {strides = array<i32>} : memref<1x8xf32, #tpu.memory_space<vmem>>, vector<1x8xf32>,
    return
  }
}

</mosaic_0001>

<llo_original>
// kernel: state_model_encoder_export.1
$region0: #{state_model_encoder_export.1}
  #allocation0 [shape = 'u32[]', space=smem, size = 0x4, offset = 0x4, fixed_abs, tag = 'smem constant byte address 0x4 - core index']
  #allocation1 [shape = 'u32[72,128]{1,0:T(1,128)}', space=vmem, size = 0x9000, scoped, tag = 'internal scratch']
  %s0 = inlined_call_operand.vmem [shape: bf16[16,16], index: 0, kind: input, shape index: {}]
  %s1 = inlined_call_operand.vmem [shape: bf16[8,8], index: 1, kind: input, shape index: {}]
  %s2 = inlined_call_operand.vmem [shape: bf16[8,16], index: 2, kind: input, shape index: {}]
  %s3 = inlined_call_operand.vmem [shape: f32[8,16], index: 3, kind: input, shape index: {}]
  %s4 = inlined_call_operand.vmem [shape: f32[16,1], index: 4, kind: input, shape index: {}]
  %s5 = inlined_call_operand.vmem [shape: f32[8,1], index: 5, kind: input, shape index: {}]
  %s6 = inlined_call_operand.vmem [shape: f32[8,1], index: 6, kind: input, shape index: {}]
  %s7 = inlined_call_operand.vmem [shape: bf16[16,8], index: 7, kind: input, shape index: {}]
  %s8 = inlined_call_operand.vmem [shape: bf16[8,8], index: 8, kind: input, shape index: {}]
  %s9 = inlined_call_operand.vmem [shape: bf16[3,8,128], index: 9, kind: input, shape index: {}]
  %s10 = inlined_call_operand.vmem [shape: bf16[4,8,128], index: 10, kind: input, shape index: {}]
  %s11 = inlined_call_operand.vmem [shape: bf16[128,128], index: 11, kind: input, shape index: {}]
  %s12 = inlined_call_operand.vmem [shape: bf16[128,128], index: 12, kind: input, shape index: {}]
  %s13 = inlined_call_operand.vmem [shape: bf16[128,128], index: 13, kind: input, shape index: {}]
  %s14 = inlined_call_operand.vmem [shape: bf16[128,128], index: 14, kind: input, shape index: {}]
  %s15 = inlined_call_operand.vmem [shape: f32[8,128], index: 15, kind: input, shape index: {}]
  %s16 = inlined_call_operand.hbm [shape: f32[1,8], index: 16, kind: output, shape index: {}]
  %s17 = sld [smem:[#allocation0]]
  $region74: #{state_model_encoder_export.1} parent=0
    _
  %s19 = ssub.s32 1, %s17
  %s20 = scalar_select 0, %s19, %s17
  $region1: #{state_model_encoder_export.1} parent=0
    #allocation2 [shape = 'u8[512]{0}', space=vmem, size = 0x400, scoped, tag = 'output window, operand 0, single buffered']
    #allocation3 [shape = 's32[1]{0}', space=sflag, size = 0x4, scoped, tag = 'scoped memory for state_model_encoder_export.1']
    %21 = vsyncpa [#allocation3], 0
    // Predicated region
    $region2: #{state_model_encoder_export.1} parent=1 // pred_check
      _
    $region3: #{state_model_encoder_export.1} parent=1 // pred_check_branch
      %23 = sbr.rel (0) target = $region5
    $region4: #{state_model_encoder_export.1} parent=1 // pred_region
      _
    $region5: #{state_model_encoder_export.1} parent=1 // pred_fallthru
      _
    // Predicated region
    $region6: #{state_model_encoder_export.1} parent=1 // pred_check
      _
    $region7: #{state_model_encoder_export.1} parent=1 // pred_check_branch
      %25 = sbr.rel (0) target = $region9
    $region8: #{state_model_encoder_export.1} parent=1 // pred_region
      _
    $region9: #{state_model_encoder_export.1} parent=1 // pred_fallthru
      _
    // Predicated region
    $region10: #{state_model_encoder_export.1} parent=1 // pred_check
      _
    $region11: #{state_model_encoder_export.1} parent=1 // pred_check_branch
      %27 = sbr.rel (0) target = $region13
    $region12: #{state_model_encoder_export.1} parent=1 // pred_region
      _
    $region13: #{state_model_encoder_export.1} parent=1 // pred_fallthru
      _
    // Predicated region
    $region14: #{state_model_encoder_export.1} parent=1 // pred_check
      _
    $region15: #{state_model_encoder_export.1} parent=1 // pred_check_branch
      %29 = sbr.rel (0) target = $region17
    $region16: #{state_model_encoder_export.1} parent=1 // pred_region
      _
    $region17: #{state_model_encoder_export.1} parent=1 // pred_fallthru
      _
    // Predicated region
    $region18: #{state_model_encoder_export.1} parent=1 // pred_check
      _
    $region19: #{state_model_encoder_export.1} parent=1 // pred_check_branch
      %31 = sbr.rel (0) target = $region21
    $region20: #{state_model_encoder_export.1} parent=1 // pred_region
      _
    $region21: #{state_model_encoder_export.1} parent=1 // pred_fallthru
      _
    // Predicated region
    $region22: #{state_model_encoder_export.1} parent=1 // pred_check
      _
    $region23: #{state_model_encoder_export.1} parent=1 // pred_check_branch
      %33 = sbr.rel (0) target = $region25
    $region24: #{state_model_encoder_export.1} parent=1 // pred_region
      _
    $region25: #{state_model_encoder_export.1} parent=1 // pred_fallthru
      _
    // Predicated region
    $region26: #{state_model_encoder_export.1} parent=1 // pred_check
      _
    $region27: #{state_model_encoder_export.1} parent=1 // pred_check_branch
      %35 = sbr.rel (0) target = $region29
    $region28: #{state_model_encoder_export.1} parent=1 // pred_region
      _
    $region29: #{state_model_encoder_export.1} parent=1 // pred_fallthru
      _
    // Predicated region
    $region30: #{state_model_encoder_export.1} parent=1 // pred_check
      _
    $region31: #{state_model_encoder_export.1} parent=1 // pred_check_branch
      %37 = sbr.rel (0) target = $region33
    $region32: #{state_model_encoder_export.1} parent=1 // pred_region
      _
    $region33: #{state_model_encoder_export.1} parent=1 // pred_fallthru
      _
    // Predicated region
    $region34: #{state_model_encoder_export.1} parent=1 // pred_check
      _
    $region35: #{state_model_encoder_export.1} parent=1 // pred_check_branch
      %39 = sbr.rel (0) target = $region37
    $region36: #{state_model_encoder_export.1} parent=1 // pred_region
      _
    $region37: #{state_model_encoder_export.1} parent=1 // pred_fallthru
      _
    // Predicated region
    $region38: #{state_model_encoder_export.1} parent=1 // pred_check
      _
    $region39: #{state_model_encoder_export.1} parent=1 // pred_check_branch
      %41 = sbr.rel (0) target = $region41
    $region40: #{state_model_encoder_export.1} parent=1 // pred_region
      _
    $region41: #{state_model_encoder_export.1} parent=1 // pred_fallthru
      _
    // Predicated region
    $region42: #{state_model_encoder_export.1} parent=1 // pred_check
      _
    $region43: #{state_model_encoder_export.1} parent=1 // pred_check_branch
      %43 = sbr.rel (0) target = $region45
    $region44: #{state_model_encoder_export.1} parent=1 // pred_region
      _
    $region45: #{state_model_encoder_export.1} parent=1 // pred_fallthru
      _
    // Predicated region
    $region46: #{state_model_encoder_export.1} parent=1 // pred_check
      _
    $region47: #{state_model_encoder_export.1} parent=1 // pred_check_branch
      %45 = sbr.rel (0) target = $region49
    $region48: #{state_model_encoder_export.1} parent=1 // pred_region
      _
    $region49: #{state_model_encoder_export.1} parent=1 // pred_fallthru
      _
    // Predicated region
    $region50: #{state_model_encoder_export.1} parent=1 // pred_check
      _
    $region51: #{state_model_encoder_export.1} parent=1 // pred_check_branch
      %47 = sbr.rel (0) target = $region53
    $region52: #{state_model_encoder_export.1} parent=1 // pred_region
      _
    $region53: #{state_model_encoder_export.1} parent=1 // pred_fallthru
      _
    // Predicated region
    $region54: #{state_model_encoder_export.1} parent=1 // pred_check
      _
    $region55: #{state_model_encoder_export.1} parent=1 // pred_check_branch
      %49 = sbr.rel (0) target = $region57
    $region56: #{state_model_encoder_export.1} parent=1 // pred_region
      _
    $region57: #{state_model_encoder_export.1} parent=1 // pred_fallthru
      _
    // Predicated region
    $region58: #{state_model_encoder_export.1} parent=1 // pred_check
      _
    $region59: #{state_model_encoder_export.1} parent=1 // pred_check_branch
      %51 = sbr.rel (0) target = $region61
    $region60: #{state_model_encoder_export.1} parent=1 // pred_region
      _
    $region61: #{state_model_encoder_export.1} parent=1 // pred_fallthru
      _
    // Predicated region
    $region62: #{state_model_encoder_export.1} parent=1 // pred_check
      _
    $region63: #{state_model_encoder_export.1} parent=1 // pred_check_branch
      %53 = sbr.rel (0) target = $region65
    $region64: #{state_model_encoder_export.1} parent=1 // pred_region
      _
    $region65: #{state_model_encoder_export.1} parent=1 // pred_fallthru
      _
    %v55 = vld [vmem:[%s15] sm:$0xff]
    %v56 = vld [vmem:[%s0] sm:$0xf]
    %v57 = vld [vmem:[%s0 + $0x4] sm:$0xf]
    %v58 = vld [vmem:[%s4] sm:$0xff]
    %v59 = vld [vmem:[%s4 + $0x8] sm:$0xff]
    %v60 = vld [vmem:[%s7] sm:$0xf]
    %v61 = vld [vmem:[%s7 + $0x4] sm:$0xf]
    %s62 = scalar_lea.vmem %s9, 8
    %v63 = vld [vmem:[%s62] sm:$0xf]
    %v66 = vunpack.c.l.b16 %v60
    %v67 = vunpack.c.l.b16 %v61
    %v68 = vpack.c.b16 %v67, %v66
    %vm69 = vcmask 64512
    %v71 = vsel %vm69, %v68, 0
    %vm73 = vcmask 1043456
    %v75 = vsel %vm73, %v63, 0
    %77 = vmatpush.bf16.msra.mxu0 0
    %78 = vmatpush.bf16.msra.mxu0 0
    %79 = vmatpush.bf16.msra.mxu0 0
    %80 = vmatpush.bf16.msra.mxu0 0
    %81 = vmatpush.bf16.msra.mxu0 0
    %82 = vmatpush.bf16.msra.mxu0 0
    %83 = vmatpush.bf16.msra.mxu0 0
    %84 = vmatpush.bf16.msra.mxu0 %v75
    %85 = vmatmul.bf16.gmra.mxu0 %v71
    %v86 = vpop.f32.mrf.mxu0
    %v87 = vadd.f32 0.0, %v86
    %v88 = vpop.f32.mrf.mxu0
    %v89 = vadd.f32 0.0, %v88
    %90 = vdwg.mxu0
    %92 = vset.pattern.permute.xlu0 0
    %93 = vperm.xlu0 %92, %v58
    %v94 = vpop.permute.xlu0 %93
    %97 = vset.pattern.permute.xlu0 0
    %98 = vperm.xlu0 %97, %v59
    %v99 = vpop.permute.xlu0 %98
    %v101 = vmul.f32 %v94, %v87
    %v102 = vmul.f32 %v99, %v89
    %v103 = vpack.c.bf16 %v102, %v101
    %v106 = vunpack.c.l.b16 %v56
    %v107 = vunpack.c.l.b16 %v57
    %v108 = vpack.c.b16 %v107, %v106
    %vm109 = vcmask 130048
    %v111 = vsel %vm109, %v108, 0
    %113 = vmatpush.bf16.msra.mxu0 0
    %114 = vmatpush.bf16.msra.mxu0 0
    %115 = vmatpush.bf16.msra.mxu0 0
    %116 = vmatpush.bf16.msra.mxu0 0
    %117 = vmatpush.bf16.msra.mxu0 0
    %118 = vmatpush.bf16.msra.mxu0 0
    %119 = vmatpush.bf16.msra.mxu0 0
    %120 = vmatpush.bf16.msra.mxu0 %v103
    %121 = vmatmul.bf16.gmra.mxu0 %v111
    %v122 = vpop.f32.mrf.mxu0
    %v123 = vadd.f32 0.0, %v122
    %v124 = vpop.f32.mrf.mxu0
    %v125 = vadd.f32 0.0, %v124
    %126 = vdwg.mxu0
    %v127 = vmul.f32 %v94, %v123
    %v128 = vmul.f32 %v99, %v125
    %s129 = scalar_lea.vmem %s9, 4
    %v130 = vld [vmem:[%s129] sm:$0xf]
    %v132 = vsel %vm73, %v130, 0
    %134 = vmatpush.bf16.msra.mxu0 0
    %135 = vmatpush.bf16.msra.mxu0 0
    %136 = vmatpush.bf16.msra.mxu0 0
    %137 = vmatpush.bf16.msra.mxu0 0
    %138 = vmatpush.bf16.msra.mxu0 0
    %139 = vmatpush.bf16.msra.mxu0 0
    %140 = vmatpush.bf16.msra.mxu0 0
    %141 = vmatpush.bf16.msra.mxu0 %v132
    %142 = vmatmul.bf16.gmra.mxu0 %v71
    %v143 = vpop.f32.mrf.mxu0
    %v144 = vadd.f32 %v127, %v143
    %v145 = vpop.f32.mrf.mxu0
    %v146 = vadd.f32 %v128, %v145
    %147 = vdwg.mxu0
    %v148 = vmul.f32 %v94, %v144
    %v149 = vmul.f32 %v99, %v146
    %v150 = vpack.c.bf16 %v149, %v148
    %151 = vmatpush.bf16.msra.mxu0 0
    %152 = vmatpush.bf16.msra.mxu0 0
    %153 = vmatpush.bf16.msra.mxu0 0
    %154 = vmatpush.bf16.msra.mxu0 0
    %155 = vmatpush.bf16.msra.mxu0 0
    %156 = vmatpush.bf16.msra.mxu0 0
    %157 = vmatpush.bf16.msra.mxu0 0
    %158 = vmatpush.bf16.msra.mxu0 %v150
    %159 = vmatmul.bf16.gmra.mxu0 %v111
    %v160 = vpop.f32.mrf.mxu0
    %v161 = vadd.f32 0.0, %v160
    %v162 = vpop.f32.mrf.mxu0
    %v163 = vadd.f32 0.0, %v162
    %164 = vdwg.mxu0
    %v165 = vmul.f32 %v94, %v161
    %v166 = vmul.f32 %v99, %v163
    %v167 = vld [vmem:[%s9] sm:$0xf]
    %v169 = vsel %vm73, %v167, 0
    %171 = vmatpush.bf16.msra.mxu0 0
    %172 = vmatpush.bf16.msra.mxu0 0
    %173 = vmatpush.bf16.msra.mxu0 0
    %174 = vmatpush.bf16.msra.mxu0 0
    %175 = vmatpush.bf16.msra.mxu0 0
    %176 = vmatpush.bf16.msra.mxu0 0
    %177 = vmatpush.bf16.msra.mxu0 0
    %178 = vmatpush.bf16.msra.mxu0 %v169
    %179 = vmatmul.bf16.gmra.mxu0 %v71
    %v180 = vpop.f32.mrf.mxu0
    %v181 = vadd.f32 %v165, %v180
    %v182 = vpop.f32.mrf.mxu0
    %v183 = vadd.f32 %v166, %v182
    %184 = vdwg.mxu0
    %v185 = vperm.slane %v55, 0
    %v186 = vadd.f32 %v181, %v185
    %v187 = vadd.f32 %v183, %v185
    %v188 = vmax.f32 %v186, 0.0
    %v189 = vmax.f32 %v187, 0.0
    %v190 = vld [vmem:[%s1] sm:$0xf]
    %v191 = vld [vmem:[%s5] sm:$0xff]
    %v192 = vld [vmem:[%s8] sm:$0xf]
    %s193 = scalar_lea.vmem %s10, 12
    %v194 = vld [vmem:[%s193] sm:$0xf]
    %v196 = vsel %vm69, %v192, 0
    %v199 = vsel %vm73, %v194, 0
    %201 = vmatpush.bf16.msra.mxu0 0
    %202 = vmatpush.bf16.msra.mxu0 0
    %203 = vmatpush.bf16.msra.mxu0 0
    %204 = vmatpush.bf16.msra.mxu0 0
    %205 = vmatpush.bf16.msra.mxu0 0
    %206 = vmatpush.bf16.msra.mxu0 0
    %207 = vmatpush.bf16.msra.mxu0 0
    %208 = vmatpush.bf16.msra.mxu0 %v199
    %209 = vmatmul.bf16.gmra.mxu0 %v196
    %v210 = vpop.f32.mrf.mxu0
    %v211 = vadd.f32 0.0, %v210
    %v212 = vpop.f32.mrf.mxu0
    %213 = vdwg.mxu0
    %215 = vset.pattern.permute.xlu0 0
    %216 = vperm.xlu0 %215, %v191
    %v217 = vpop.permute.xlu0 %216
    %v219 = vmul.f32 %v217, %v211
    %v220 = vpack.c.bf16 %v219, %v219
    %v222 = vsel %vm69, %v190, 0
    %v225 = vsel %vm73, %v220, 0
    %227 = vmatpush.bf16.msra.mxu0 0
    %228 = vmatpush.bf16.msra.mxu0 0
    %229 = vmatpush.bf16.msra.mxu0 0
    %230 = vmatpush.bf16.msra.mxu0 0
    %231 = vmatpush.bf16.msra.mxu0 0
    %232 = vmatpush.bf16.msra.mxu0 0
    %233 = vmatpush.bf16.msra.mxu0 0
    %234 = vmatpush.bf16.msra.mxu0 %v225
    %235 = vmatmul.bf16.gmra.mxu0 %v222
    %v236 = vpop.f32.mrf.mxu0
    %v237 = vadd.f32 0.0, %v236
    %v238 = vpop.f32.mrf.mxu0
    %239 = vdwg.mxu0
    %v240 = vmul.f32 %v217, %v237
    %s241 = scalar_lea.vmem %s10, 8
    %v242 = vld [vmem:[%s241] sm:$0xf]
    %v244 = vsel %vm73, %v242, 0
    %246 = vmatpush.bf16.msra.mxu0 0
    %247 = vmatpush.bf16.msra.mxu0 0
    %248 = vmatpush.bf16.msra.mxu0 0
    %249 = vmatpush.bf16.msra.mxu0 0
    %250 = vmatpush.bf16.msra.mxu0 0
    %251 = vmatpush.bf16.msra.mxu0 0
    %252 = vmatpush.bf16.msra.mxu0 0
    %253 = vmatpush.bf16.msra.mxu0 %v244
    %254 = vmatmul.bf16.gmra.mxu0 %v196
    %v255 = vpop.f32.mrf.mxu0
    %v256 = vadd.f32 %v240, %v255
    %v257 = vpop.f32.mrf.mxu0
    %258 = vdwg.mxu0
    %v259 = vmul.f32 %v217, %v256
    %v260 = vpack.c.bf16 %v259, %v259
    %v262 = vsel %vm73, %v260, 0
    %264 = vmatpush.bf16.msra.mxu0 0
    %265 = vmatpush.bf16.msra.mxu0 0
    %266 = vmatpush.bf16.msra.mxu0 0
    %267 = vmatpush.bf16.msra.mxu0 0
    %268 = vmatpush.bf16.msra.mxu0 0
    %269 = vmatpush.bf16.msra.mxu0 0
    %270 = vmatpush.bf16.msra.mxu0 0
    %271 = vmatpush.bf16.msra.mxu0 %v262
    %272 = vmatmul.bf16.gmra.mxu0 %v222
    %v273 = vpop.f32.mrf.mxu0
    %v274 = vadd.f32 0.0, %v273
    %v275 = vpop.f32.mrf.mxu0
    %276 = vdwg.mxu0
    %v277 = vmul.f32 %v217, %v274
    %s278 = scalar_lea.vmem %s10, 4
    %v279 = vld [vmem:[%s278] sm:$0xf]
    %v281 = vsel %vm73, %v279, 0
    %283 = vmatpush.bf16.msra.mxu0 0
    %284 = vmatpush.bf16.msra.mxu0 0
    %285 = vmatpush.bf16.msra.mxu0 0
    %286 = vmatpush.bf16.msra.mxu0 0
    %287 = vmatpush.bf16.msra.mxu0 0
    %288 = vmatpush.bf16.msra.mxu0 0
    %289 = vmatpush.bf16.msra.mxu0 0
    %290 = vmatpush.bf16.msra.mxu0 %v281
    %291 = vmatmul.bf16.gmra.mxu0 %v196
    %v292 = vpop.f32.mrf.mxu0
    %v293 = vadd.f32 %v277, %v292
    %v294 = vpop.f32.mrf.mxu0
    %295 = vdwg.mxu0
    %v296 = vmul.f32 %v217, %v293
    %v297 = vpack.c.bf16 %v296, %v296
    %v299 = vsel %vm73, %v297, 0
    %301 = vmatpush.bf16.msra.mxu0 0
    %302 = vmatpush.bf16.msra.mxu0 0
    %303 = vmatpush.bf16.msra.mxu0 0
    %304 = vmatpush.bf16.msra.mxu0 0
    %305 = vmatpush.bf16.msra.mxu0 0
    %306 = vmatpush.bf16.msra.mxu0 0
    %307 = vmatpush.bf16.msra.mxu0 0
    %308 = vmatpush.bf16.msra.mxu0 %v299
    %309 = vmatmul.bf16.gmra.mxu0 %v222
    %v310 = vpop.f32.mrf.mxu0
    %v311 = vadd.f32 0.0, %v310
    %v312 = vpop.f32.mrf.mxu0
    %313 = vdwg.mxu0
    %v314 = vmul.f32 %v217, %v311
    %v315 = vld [vmem:[%s10] sm:$0xf]
    %v317 = vsel %vm73, %v315, 0
    %319 = vmatpush.bf16.msra.mxu0 0
    %320 = vmatpush.bf16.msra.mxu0 0
    %321 = vmatpush.bf16.msra.mxu0 0
    %322 = vmatpush.bf16.msra.mxu0 0
    %323 = vmatpush.bf16.msra.mxu0 0
    %324 = vmatpush.bf16.msra.mxu0 0
    %325 = vmatpush.bf16.msra.mxu0 0
    %326 = vmatpush.bf16.msra.mxu0 %v317
    %327 = vmatmul.bf16.gmra.mxu0 %v196
    %v328 = vpop.f32.mrf.mxu0
    %v329 = vadd.f32 %v314, %v328
    %v330 = vpop.f32.mrf.mxu0
    %331 = vdwg.mxu0
    %v332 = vperm.slane %v55, 1
    %v333 = vadd.f32 %v329, %v332
    %v334 = vmax.f32 %v333, 0.0
    %v335 = vpack.c.bf16 %v189, %v188
    %v336 = vld [vmem:[%s11] sm:$0xf]
    %v337 = vld [vmem:[%s11 + $0x4] sm:$0xf]
    %v338 = vld [vmem:[%s11 + $0x8] sm:$0xf]
    %v339 = vld [vmem:[%s11 + $0xc] sm:$0xf]
    %v340 = vld [vmem:[%s11 + $0x10] sm:$0xf]
    %v341 = vld [vmem:[%s11 + $0x14] sm:$0xf]
    %v342 = vld [vmem:[%s11 + $0x18] sm:$0xf]
    %v343 = vld [vmem:[%s11 + $0x1c] sm:$0xf]
    %v344 = vld [vmem:[%s11 + $0x20] sm:$0xf]
    %v345 = vld [vmem:[%s11 + $0x24] sm:$0xf]
    %v346 = vld [vmem:[%s11 + $0x28] sm:$0xf]
    %v347 = vld [vmem:[%s11 + $0x2c] sm:$0xf]
    %v348 = vld [vmem:[%s11 + $0x30] sm:$0xf]
    %v349 = vld [vmem:[%s11 + $0x34] sm:$0xf]
    %v350 = vld [vmem:[%s11 + $0x38] sm:$0xf]
    %v351 = vld [vmem:[%s11 + $0x3c] sm:$0xf]
    %v368 = vunpack.c.l.b16 %v336
    %v369 = vunpack.c.l.b16 %v337
    %v370 = vunpack.c.l.b16 %v338
    %v371 = vunpack.c.l.b16 %v339
    %v372 = vunpack.c.l.b16 %v340
    %v373 = vunpack.c.l.b16 %v341
    %v374 = vunpack.c.l.b16 %v342
    %v375 = vunpack.c.l.b16 %v343
    %v376 = vunpack.c.l.b16 %v344
    %v377 = vunpack.c.l.b16 %v345
    %v378 = vunpack.c.l.b16 %v346
    %v379 = vunpack.c.l.b16 %v347
    %v380 = vunpack.c.l.b16 %v348
    %v381 = vunpack.c.l.b16 %v349
    %v382 = vunpack.c.l.b16 %v350
    %v383 = vunpack.c.l.b16 %v351
    %v384 = vpack.c.b16 %v369, %v368
    %v385 = vpack.c.b16 %v371, %v370
    %v386 = vpack.c.b16 %v373, %v372
    %v387 = vpack.c.b16 %v375, %v374
    %v388 = vpack.c.b16 %v377, %v376
    %v389 = vpack.c.b16 %v379, %v378
    %v390 = vpack.c.b16 %v381, %v380
    %v391 = vpack.c.b16 %v383, %v382
    %400 = vmatpush.bf16.msra.mxu0 %v391
    %401 = vmatpush.bf16.msra.mxu0 %v390
    %402 = vmatpush.bf16.msra.mxu0 %v389
    %403 = vmatpush.bf16.msra.mxu0 %v388
    %404 = vmatpush.bf16.msra.mxu0 %v387
    %405 = vmatpush.bf16.msra.mxu0 %v386
    %406 = vmatpush.bf16.msra.mxu0 %v385
    %407 = vmatpush.bf16.msra.mxu0 %v384
    %408 = vmatmul.bf16.gmra.mxu0 %v335
    %v409 = vpop.f32.mrf.mxu0
    %v410 = vadd.f32 0.0, %v409
    %v411 = vpop.f32.mrf.mxu0
    %v412 = vadd.f32 0.0, %v411
    %413 = vdwg.mxu0
    %v414 = vpack.c.bf16 %v334, %v334
    %v415 = vld [vmem:[%s12] sm:$0xf]
    %v416 = vld [vmem:[%s12 + $0x4] sm:$0xf]
    %v417 = vld [vmem:[%s12 + $0x8] sm:$0xf]
    %v418 = vld [vmem:[%s12 + $0xc] sm:$0xf]
    %v419 = vld [vmem:[%s12 + $0x10] sm:$0xf]
    %v420 = vld [vmem:[%s12 + $0x14] sm:$0xf]
    %v421 = vld [vmem:[%s12 + $0x18] sm:$0xf]
    %v422 = vld [vmem:[%s12 + $0x1c] sm:$0xf]
    %v423 = vld [vmem:[%s12 + $0x20] sm:$0xf]
    %v424 = vld [vmem:[%s12 + $0x24] sm:$0xf]
    %v425 = vld [vmem:[%s12 + $0x28] sm:$0xf]
    %v426 = vld [vmem:[%s12 + $0x2c] sm:$0xf]
    %v427 = vld [vmem:[%s12 + $0x30] sm:$0xf]
    %v428 = vld [vmem:[%s12 + $0x34] sm:$0xf]
    %v429 = vld [vmem:[%s12 + $0x38] sm:$0xf]
    %v430 = vld [vmem:[%s12 + $0x3c] sm:$0xf]
    %v447 = vunpack.c.l.b16 %v415
    %v448 = vunpack.c.l.b16 %v416
    %v449 = vunpack.c.l.b16 %v417
    %v450 = vunpack.c.l.b16 %v418
    %v451 = vunpack.c.l.b16 %v419
    %v452 = vunpack.c.l.b16 %v420
    %v453 = vunpack.c.l.b16 %v421
    %v454 = vunpack.c.l.b16 %v422
    %v455 = vunpack.c.l.b16 %v423
    %v456 = vunpack.c.l.b16 %v424
    %v457 = vunpack.c.l.b16 %v425
    %v458 = vunpack.c.l.b16 %v426
    %v459 = vunpack.c.l.b16 %v427
    %v460 = vunpack.c.l.b16 %v428
    %v461 = vunpack.c.l.b16 %v429
    %v462 = vunpack.c.l.b16 %v430
    %v463 = vpack.c.b16 %v448, %v447
    %v464 = vpack.c.b16 %v450, %v449
    %v465 = vpack.c.b16 %v452, %v451
    %v466 = vpack.c.b16 %v454, %v453
    %v467 = vpack.c.b16 %v456, %v455
    %v468 = vpack.c.b16 %v458, %v457
    %v469 = vpack.c.b16 %v460, %v459
    %v470 = vpack.c.b16 %v462, %v461
    %479 = vmatpush.bf16.msra.mxu0 %v470
    %480 = vmatpush.bf16.msra.mxu0 %v469
    %481 = vmatpush.bf16.msra.mxu0 %v468
    %482 = vmatpush.bf16.msra.mxu0 %v467
    %483 = vmatpush.bf16.msra.mxu0 %v466
    %484 = vmatpush.bf16.msra.mxu0 %v465
    %485 = vmatpush.bf16.msra.mxu0 %v464
    %486 = vmatpush.bf16.msra.mxu0 %v463
    %487 = vmatmul.bf16.gmra.mxu0 %v414
    %v488 = vpop.f32.mrf.mxu0
    %v489 = vadd.f32 0.0, %v488
    %v490 = vpop.f32.mrf.mxu0
    %491 = vdwg.mxu0
    %v492 = vperm.slane %v55, 5
    %v493 = vmul.f32 %v489, %v492
    %494 = vadd.xlane.f32.xlu0 %v493
    %v495 = vpop.xlane.xlu0 %494
    %v497 = vrot.slane %v55, 4
    %499 = vmatpush.xpose.msra.mxu0 0.0
    %500 = vmatpush.xpose.msra.mxu0 0.0
    %501 = vmatpush.xpose.msra.mxu0 0.0
    %502 = vmatpush.xpose.msra.mxu0 0.0
    %503 = vmatpush.xpose.msra.mxu0 0.0
    %504 = vmatpush.xpose.msra.mxu0 0.0
    %505 = vmatpush.xpose.msra.mxu0 0.0
    %506 = vmatpush.xpose.msra.mxu0 0.0
    %507 = vmatpush.xpose.msra.mxu0 0.0
    %508 = vmatpush.xpose.msra.mxu0 0.0
    %509 = vmatpush.xpose.msra.mxu0 0.0
    %510 = vmatpush.xpose.msra.mxu0 0.0
    %511 = vmatpush.xpose.msra.mxu0 0.0
    %512 = vmatpush.xpose.msra.mxu0 0.0
    %513 = vmatpush.xpose.msra.mxu0 %v412
    %514 = vmatpush.xpose.msra.mxu0 %v410
    %515 = vmatmul.f32.gmra.mxu0 %v497
    %v516 = vpop.f32.mrf.mxu0
    %v517 = vadd.f32 0.0, %v516
    %518 = vdwg.mxu0
    %v519 = vperm.slane %v517, 0
    %v520 = vadd.f32 %v495, %v519
    %v521 = vld [vmem:[%s3] sm:$0xff]
    %v522 = vadd.f32 %v520, %v521
    %vm523 = vcmp.gt.f32.partialorder %v522, 0.0
    %v524 = vmul.f32 %v522, 0.2
    %v525 = vsel %vm523, %v522, %v524
    %v526 = vsel %vm109, %v525, -inf
    %527 = vmax.xlane.f32.xlu0 %v526
    %v528 = vpop.xlane.xlu0 %527
    %v529 = vmax.f32 %v528, -1e+20
    %v530 = vsub.f32 %v525, %v529
    %v531 = vmul.f32 %v530, 1.442695
    %v532 = vpow.pop %v531
    %v533 = vsel %vm109, %v532, 0.0
    %534 = vadd.xlane.f32.xlu0 %v533
    %v535 = vpop.xlane.xlu0 %534
    %v536 = vmax.f32 %v535, 1e-20
    %v537 = vrcp.pop %v536
    %v538 = vmul.f32 %v532, %v537
    %v539 = vpack.c.bf16 %v538, %v538
    %v540 = vpack.c.bf16 %v412, %v410
    %v541 = vperm.slane %v55, 2
    %v543 = vsel %vm109, %v539, 0
    %545 = vmatpush.bf16.msra.mxu0 0
    %546 = vmatpush.bf16.msra.mxu0 0
    %547 = vmatpush.bf16.msra.mxu0 0
    %548 = vmatpush.bf16.msra.mxu0 0
    %549 = vmatpush.bf16.msra.mxu0 0
    %550 = vmatpush.bf16.msra.mxu0 0
    %551 = vmatpush.bf16.msra.mxu0 0
    %552 = vmatpush.bf16.msra.mxu0 %v540
    %553 = vmatmul.bf16.gmra.mxu0 %v543
    %v554 = vpop.f32.mrf.mxu0
    %v555 = vadd.f32 %v541, %v554
    %v556 = vpop.f32.mrf.mxu0
    %557 = vdwg.mxu0
    %v558 = vmax.f32 %v555, 0.0
    %v559 = vld [vmem:[%s6] sm:$0xff]
    %v560 = vld [vmem:[%s2] sm:$0xf]
    %v562 = vsel %vm109, %v560, 0
    %564 = vmatpush.bf16.msra.mxu0 0
    %565 = vmatpush.bf16.msra.mxu0 0
    %566 = vmatpush.bf16.msra.mxu0 0
    %567 = vmatpush.bf16.msra.mxu0 0
    %568 = vmatpush.bf16.msra.mxu0 0
    %569 = vmatpush.bf16.msra.mxu0 0
    %570 = vmatpush.bf16.msra.mxu0 0
    %571 = vmatpush.bf16.msra.mxu0 %v335
    %572 = vmatmul.bf16.gmra.mxu0 %v562
    %v573 = vpop.f32.mrf.mxu0
    %v574 = vadd.f32 0.0, %v573
    %v575 = vpop.f32.mrf.mxu0
    %576 = vdwg.mxu0
    %578 = vset.pattern.permute.xlu0 0
    %579 = vperm.xlu0 %578, %v559
    %v580 = vpop.permute.xlu0 %579
    %v582 = vmul.f32 %v580, %v574
    %v583 = vpack.c.bf16 %v582, %v582
    %v584 = vld [vmem:[%s13] sm:$0xf]
    %v585 = vld [vmem:[%s13 + $0x4] sm:$0xf]
    %v586 = vld [vmem:[%s13 + $0x8] sm:$0xf]
    %v587 = vld [vmem:[%s13 + $0xc] sm:$0xf]
    %v588 = vld [vmem:[%s13 + $0x10] sm:$0xf]
    %v589 = vld [vmem:[%s13 + $0x14] sm:$0xf]
    %v590 = vld [vmem:[%s13 + $0x18] sm:$0xf]
    %v591 = vld [vmem:[%s13 + $0x1c] sm:$0xf]
    %v592 = vld [vmem:[%s13 + $0x20] sm:$0xf]
    %v593 = vld [vmem:[%s13 + $0x24] sm:$0xf]
    %v594 = vld [vmem:[%s13 + $0x28] sm:$0xf]
    %v595 = vld [vmem:[%s13 + $0x2c] sm:$0xf]
    %v596 = vld [vmem:[%s13 + $0x30] sm:$0xf]
    %v597 = vld [vmem:[%s13 + $0x34] sm:$0xf]
    %v598 = vld [vmem:[%s13 + $0x38] sm:$0xf]
    %v599 = vld [vmem:[%s13 + $0x3c] sm:$0xf]
    %v600 = vpack.c.bf16 %v558, %v558
    %v601 = vld [vmem:[%s14] sm:$0xf]
    %v602 = vld [vmem:[%s14 + $0x4] sm:$0xf]
    %v603 = vld [vmem:[%s14 + $0x8] sm:$0xf]
    %v604 = vld [vmem:[%s14 + $0xc] sm:$0xf]
    %v605 = vld [vmem:[%s14 + $0x10] sm:$0xf]
    %v606 = vld [vmem:[%s14 + $0x14] sm:$0xf]
    %v607 = vld [vmem:[%s14 + $0x18] sm:$0xf]
    %v608 = vld [vmem:[%s14 + $0x1c] sm:$0xf]
    %v609 = vld [vmem:[%s14 + $0x20] sm:$0xf]
    %v610 = vld [vmem:[%s14 + $0x24] sm:$0xf]
    %v611 = vld [vmem:[%s14 + $0x28] sm:$0xf]
    %v612 = vld [vmem:[%s14 + $0x2c] sm:$0xf]
    %v613 = vld [vmem:[%s14 + $0x30] sm:$0xf]
    %v614 = vld [vmem:[%s14 + $0x34] sm:$0xf]
    %v615 = vld [vmem:[%s14 + $0x38] sm:$0xf]
    %v616 = vld [vmem:[%s14 + $0x3c] sm:$0xf]
    %v633 = vunpack.c.l.b16 %v601
    %v634 = vunpack.c.l.b16 %v602
    %v635 = vunpack.c.l.b16 %v603
    %v636 = vunpack.c.l.b16 %v604
    %v637 = vunpack.c.l.b16 %v605
    %v638 = vunpack.c.l.b16 %v606
    %v639 = vunpack.c.l.b16 %v607
    %v640 = vunpack.c.l.b16 %v608
    %v641 = vunpack.c.l.b16 %v609
    %v642 = vunpack.c.l.b16 %v610
    %v643 = vunpack.c.l.b16 %v611
    %v644 = vunpack.c.l.b16 %v612
    %v645 = vunpack.c.l.b16 %v613
    %v646 = vunpack.c.l.b16 %v614
    %v647 = vunpack.c.l.b16 %v615
    %v648 = vunpack.c.l.b16 %v616
    %v649 = vpack.c.b16 %v634, %v633
    %v650 = vpack.c.b16 %v636, %v635
    %v651 = vpack.c.b16 %v638, %v637
    %v652 = vpack.c.b16 %v640, %v639
    %v653 = vpack.c.b16 %v642, %v641
    %v654 = vpack.c.b16 %v644, %v643
    %v655 = vpack.c.b16 %v646, %v645
    %v656 = vpack.c.b16 %v648, %v647
    %665 = vmatpush.bf16.msra.mxu0 %v656
    %666 = vmatpush.bf16.msra.mxu0 %v655
    %667 = vmatpush.bf16.msra.mxu0 %v654
    %668 = vmatpush.bf16.msra.mxu0 %v653
    %669 = vmatpush.bf16.msra.mxu0 %v652
    %670 = vmatpush.bf16.msra.mxu0 %v651
    %671 = vmatpush.bf16.msra.mxu0 %v650
    %672 = vmatpush.bf16.msra.mxu0 %v649
    %673 = vmatmul.bf16.gmra.mxu0 %v600
    %v674 = vpop.f32.mrf.mxu0
    %v675 = vadd.f32 0.0, %v674
    %v676 = vpop.f32.mrf.mxu0
    %677 = vdwg.mxu0
    %v694 = vunpack.c.l.b16 %v584
    %v695 = vunpack.c.l.b16 %v585
    %v696 = vunpack.c.l.b16 %v586
    %v697 = vunpack.c.l.b16 %v587
    %v698 = vunpack.c.l.b16 %v588
    %v699 = vunpack.c.l.b16 %v589
    %v700 = vunpack.c.l.b16 %v590
    %v701 = vunpack.c.l.b16 %v591
    %v702 = vunpack.c.l.b16 %v592
    %v703 = vunpack.c.l.b16 %v593
    %v704 = vunpack.c.l.b16 %v594
    %v705 = vunpack.c.l.b16 %v595
    %v706 = vunpack.c.l.b16 %v596
    %v707 = vunpack.c.l.b16 %v597
    %v708 = vunpack.c.l.b16 %v598
    %v709 = vunpack.c.l.b16 %v599
    %v710 = vpack.c.b16 %v695, %v694
    %v711 = vpack.c.b16 %v697, %v696
    %v712 = vpack.c.b16 %v699, %v698
    %v713 = vpack.c.b16 %v701, %v700
    %v714 = vpack.c.b16 %v703, %v702
    %v715 = vpack.c.b16 %v705, %v704
    %v716 = vpack.c.b16 %v707, %v706
    %v717 = vpack.c.b16 %v709, %v708
    %726 = vmatpush.bf16.msra.mxu0 %v717
    %727 = vmatpush.bf16.msra.mxu0 %v716
    %728 = vmatpush.bf16.msra.mxu0 %v715
    %729 = vmatpush.bf16.msra.mxu0 %v714
    %730 = vmatpush.bf16.msra.mxu0 %v713
    %731 = vmatpush.bf16.msra.mxu0 %v712
    %732 = vmatpush.bf16.msra.mxu0 %v711
    %733 = vmatpush.bf16.msra.mxu0 %v710
    %734 = vmatmul.bf16.gmra.mxu0 %v583
    %v735 = vpop.f32.mrf.mxu0
    %v736 = vadd.f32 %v675, %v735
    %v737 = vpop.f32.mrf.mxu0
    %738 = vdwg.mxu0
    %v739 = vperm.slane %v55, 3
    %v740 = vadd.f32 %v736, %v739
    %v741 = vmax.f32 %v740, 0.0
    %742 = vset.pattern.permute.xlu0 0
    %743 = vperm.xlu0 %742, %v55
    %v744 = vpop.permute.xlu0 %743
    %v745 = vrot.slane %v55, 6
    %v747 = vrot.slane %v744, 7
    %749 = vmatpush.xpose.msra.mxu0 0.0
    %750 = vmatpush.xpose.msra.mxu0 0.0
    %751 = vmatpush.xpose.msra.mxu0 0.0
    %752 = vmatpush.xpose.msra.mxu0 0.0
    %753 = vmatpush.xpose.msra.mxu0 0.0
    %754 = vmatpush.xpose.msra.mxu0 0.0
    %755 = vmatpush.xpose.msra.mxu0 0.0
    %756 = vmatpush.xpose.msra.mxu0 0.0
    %757 = vmatpush.xpose.msra.mxu0 0.0
    %758 = vmatpush.xpose.msra.mxu0 0.0
    %759 = vmatpush.xpose.msra.mxu0 0.0
    %760 = vmatpush.xpose.msra.mxu0 0.0
    %761 = vmatpush.xpose.msra.mxu0 0.0
    %762 = vmatpush.xpose.msra.mxu0 0.0
    %763 = vmatpush.xpose.msra.mxu0 0.0
    %764 = vmatpush.xpose.msra.mxu0 %v741
    %765 = vmatmul.f32.gmra.mxu0 %v745
    %v766 = vpop.f32.mrf.mxu0
    %v767 = vadd.f32 %v747, %v766
    %768 = vdwg.mxu0
    %vm769 = vcmask 57344
    %770 = vst.msk [vmem:[#allocation2] sm:$0x1] %vm769, %v767
    // Predicated region
    $region66: #{state_model_encoder_export.1} parent=1 // pred_check
      _
    $region67: #{state_model_encoder_export.1} parent=1 // pred_check_branch
      %772 = sbr.rel (0) target = $region69
    $region68: #{state_model_encoder_export.1} parent=1 // pred_region
      %774 = vsyncadd [#allocation3], 0
      %s776 = sshll.u32 [#allocation2], 4
      %s777 = int_to_ptr.vmem [resolvable:$true] %s776
      %s778 = sshll.u32 %s16, 4
      %s779 = int_to_ptr.hbm [resolvable:$true] %s778
      %781 = dma.vmem_to_hbm [thread:$0]  %s777, 16, %s779, [#allocation3]
    $region69: #{state_model_encoder_export.1} parent=1 // pred_fallthru
      _
    // Predicated region
    $region70: #{state_model_encoder_export.1} parent=1 // pred_check
      _
    $region71: #{state_model_encoder_export.1} parent=1 // pred_check_branch
      %783 = sbr.rel (0) target = $region73
    $region72: #{state_model_encoder_export.1} parent=1 // pred_region
      %785 = dma.done [#allocation3], 16
    $region73: #{state_model_encoder_export.1} parent=1 // pred_fallthru
      _
    %786 = vsyncpa [#allocation3], 1

</llo_original>
